<compile_context>
chip_gen: v7x
topology: tpu7x:2x2x1
jax: 0.10.0
libtpu: 0.0.40
codegen_flags: <defaults>
</compile_context>

<pallas_src>
import math
from functools import partial

import jax
import jax.numpy as jnp
from jax.experimental import pallas as pl
from jax.experimental.pallas import tpu as pltpu

_VMEM_LIMIT = 32 * 1024 * 1024     # explicit scoped-VMEM cap: <= default on v6e/v7x, < physical on v5e
_VMEM_BUDGET = 24 * 1024 * 1024    # target working set when choosing the row tile TL


def _round_up(a, b):
    return -(-a // b) * b


def _cdiv(a, b):
    return -(-a // b)


# ----------------------------- in-kernel math helpers -------------------------

def _erf_fp32(x):
    # Abramowitz & Stegun 7.1.26 rational approximation, max abs error 1.5e-7 (fp32-exact).
    # TODO(synk): replace with jax.lax.erf once erf has a Mosaic lowering rule.
    a1, a2, a3, a4, a5 = 0.254829592, -0.284496736, 1.421413741, -1.453152027, 1.061405429
    p = 0.3275911
    sgn = jnp.where(x >= 0.0, 1.0, -1.0)
    ax = jnp.abs(x)
    t = 1.0 / (1.0 + p * ax)
    poly = ((((a5 * t + a4) * t + a3) * t + a2) * t + a1) * t
    return sgn * (1.0 - poly * jnp.exp(-ax * ax))


def _gelu_exact(x):
    # exact (erf-based) GELU, matching torch.nn.GELU()
    return 0.5 * x * (1.0 + _erf_fp32(x * 0.7071067811865476))


# ----------------------------- Pallas kernels ---------------------------------

def _convT_fused_kernel(x_ref, w_ref, b_ref, o_ref, acc_ref, carry_ref, *,
                        tl, sc, q_taps, add_bias, do_gelu):
    # x_ref:     (1, TL, Cin)           input rows of this tile
    # w_ref:     (Cin, Q*s*Cout)        resident weight (tap axis zero-padded to Q*s)
    # b_ref:     (1, s*Cout)            conv bias tiled over the stride phases
    # o_ref:     (1, TL, s*Cout)        packed output (row m holds time steps m*s .. m*s+s-1)
    # acc_ref:   (TL + Q - 1, s*Cout)   per-tile overlap-add accumulator (VMEM scratch)
    # carry_ref: (max(Q-1,1), s*Cout)   halo carried into the next tile (persists across grid)
    t = pl.program_id(1)

    # MXU: all K taps for TL input rows in a single matmul, fp32 accumulation.
    p = jnp.dot(x_ref[0], w_ref[...], preferred_element_type=jnp.float32)

    # Phase-decomposed overlap-add: tap chunk q contributes shifted down by q rows.
    acc_ref[pl.ds(0, tl), :] = p[:, 0:sc]
    if q_taps > 1:
        acc_ref[pl.ds(tl, q_taps - 1), :] = jnp.zeros((q_taps - 1, sc), jnp.float32)
        for q in range(1, q_taps):
            acc_ref[pl.ds(q, tl), :] += p[:, q * sc:(q + 1) * sc]

        # Add the halo produced by the previous input tile of the same batch element.
        @pl.when(t > 0)
        def _():
            acc_ref[pl.ds(0, q_taps - 1), :] += carry_ref[...]

    body = acc_ref[pl.ds(0, tl), :]
    if add_bias:
        body = body + b_ref[...]
    if do_gelu:
        body = _gelu_exact(body)
    o_ref[0] = body.astype(o_ref.dtype)

    if q_taps > 1:
        # Tail rows belong to the next tile's output block -> carry them forward.
        carry_ref[...] = acc_ref[pl.ds(tl, q_taps - 1), :]


def _colsum_stats_kernel(y_ref, sum_ref, sq_ref):
    # Per-lane sum / sum-of-squares over the (sequential) L-tile axis.
    @pl.when(pl.program_id(1) == 0)
    def _():
        sum_ref[...] = jnp.zeros_like(sum_ref)
        sq_ref[...] = jnp.zeros_like(sq_ref)
    y = y_ref[0].astype(jnp.float32)
    sum_ref[0] += jnp.sum(y, axis=0, keepdims=True)
    sq_ref[0] += jnp.sum(y * y, axis=0, keepdims=True)


def _affine_act_kernel(y_ref, a_ref, b_ref, o_ref, *, do_gelu):
    # y * scale + shift (per packed lane, i.e. per channel) then optional GELU.
    y = y_ref[0].astype(jnp.float32)
    y = y * a_ref[0] + b_ref[0]
    if do_gelu:
        y = _gelu_exact(y)
    o_ref[0] = y.astype(o_ref.dtype)


def _layernorm_act_kernel(y_ref, b_ref, g_ref, beta_ref, o_ref, *, do_gelu, eps):
    # bias add + layer norm over channels (per time step) + affine + optional GELU.
    y = y_ref[0].astype(jnp.float32) + b_ref[...]
    mean = jnp.mean(y, axis=-1, keepdims=True)
    var = jnp.mean(jnp.square(y - mean), axis=-1, keepdims=True)
    y = (y - mean) * jax.lax.rsqrt(var + eps)
    y = y * g_ref[...] + beta_ref[...]
    if do_gelu:
        y = _gelu_exact(y)
    o_ref[0] = y.astype(o_ref.dtype)


# ----------------------------- wrappers ---------------------------------------

def _pick_tile_rows(L, cin, sc, q_taps):
    """Input rows per grid step (MXU M dim): multiple of 8, sized for the VMEM budget."""
    tl = max(8, min(256, _round_up(max(L, 1), 8)))
    tl = max(tl, _round_up(max(q_taps - 1, 1), 8))   # the halo must fit inside one tile

    def vmem_bytes(t):
        # double-buffered x/out tiles + (double-buffered) weight + scratch, fp32
        return 4 * (2 * t * cin + 2 * t * sc + (t + q_taps) * sc + 2 * cin * q_taps * sc + 4 * sc)

    while tl > 8 and vmem_bytes(tl) > _VMEM_BUDGET:
        tl = max(8, _round_up(tl // 2, 8))
    return tl


def conv_transpose1d_packed(x_nlc, weight, bias, stride, *, add_bias, do_gelu,
                            compute_dtype=jnp.float32):
    """Fused ConvTranspose1d (+ optional bias/GELU epilogue), overlap-add done in VMEM.

    x_nlc  : (N, L, Cin) float32
    weight : (Cin, Cout, K) float32 (PyTorch ConvTranspose1d layout)
    returns: (packed, L_out, TL) where packed is (N, M_pad, stride*Cout) and
             packed[n, m, r*Cout+co] == out[n, m*stride + r, co] for m*stride + r < L_out.
    """
    N, L, Cin = x_nlc.shape
    Cin_w, Cout, K = weight.shape
    assert Cin_w == Cin
    s, K = int(stride), int(K)
    q = _cdiv(K, s)                 # taps per output phase
    sc = s * Cout                   # packed lane width (lane-dense output stores)
    L_out = (L - 1) * s + K

    tl = _pick_tile_rows(L, Cin, sc, q)
    T = _cdiv(L, tl)
    # +1 flush tile of zeros so the final (K - s) halo rows are emitted through the carry.
    Lp_in = (T + 1) * tl
    x_pad = jnp.pad(x_nlc.astype(compute_dtype), ((0, 0), (0, Lp_in - L), (0, 0)))

    # (Cin, Cout, K) -> (Cin, K*Cout), tap axis zero-padded to q*s taps.
    w2 = jnp.transpose(weight, (0, 2, 1)).reshape(Cin, K * Cout)
    w2 = jnp.pad(w2, ((0, 0), (0, q * sc - K * Cout))).astype(compute_dtype)
    b_packed = jnp.tile(bias.astype(jnp.float32), (s,)).reshape(1, sc)

    out_packed = pl.pallas_call(
        partial(_convT_fused_kernel, tl=tl, sc=sc, q_taps=q,
                add_bias=add_bias, do_gelu=do_gelu),
        out_shape=jax.ShapeDtypeStruct((N, (T + 1) * tl, sc), jnp.float32),
        grid=(N, T + 1),
        in_specs=[
            pl.BlockSpec((1, tl, Cin), lambda n, t: (n, t, 0)),
            pl.BlockSpec((Cin, q * sc), lambda n, t: (0, 0)),     # constant-index weight
            pl.BlockSpec((1, sc), lambda n, t: (0, 0)),
        ],
        out_specs=pl.BlockSpec((1, tl, sc), lambda n, t: (n, t, 0)),
        scratch_shapes=[
            pltpu.VMEM((tl + q - 1, sc), jnp.float32),            # overlap-add accumulator
            pltpu.VMEM((max(q - 1, 1), sc), jnp.float32),         # inter-tile halo carry
        ],
        compiler_params=pltpu.CompilerParams(
            dimension_semantics=("parallel", "arbitrary"),        # carry => sequential over L
            vmem_limit_bytes=_VMEM_LIMIT),
    )(x_pad, w2, b_packed)
    return out_packed, L_out, tl


def groupnorm_stats_packed(packed, tl):
    """Tiled reduction: per packed-lane sum / sum-of-squares over all rows (pass 1 of 2)."""
    N, Mp, sc = packed.shape
    sums, sqs = pl.pallas_call(
        _colsum_stats_kernel,
        out_shape=(jax.ShapeDtypeStruct((N, 1, sc), jnp.float32),
                   jax.ShapeDtypeStruct((N, 1, sc), jnp.float32)),
        grid=(N, Mp // tl),
        in_specs=[pl.BlockSpec((1, tl, sc), lambda n, t: (n, t, 0))],
        out_specs=(pl.BlockSpec((1, 1, sc), lambda n, t: (n, 0, 0)),
                   pl.BlockSpec((1, 1, sc), lambda n, t: (n, 0, 0))),
        compiler_params=pltpu.CompilerParams(
            dimension_semantics=("parallel", "arbitrary"),
            vmem_limit_bytes=_VMEM_LIMIT),
    )(packed)
    return sums[:, 0, :], sqs[:, 0, :]


def affine_act_packed(packed, scale_packed, shift_packed, tl, do_gelu):
    """y * scale + shift (+ GELU), tiled over the packed layout (pass 2 of 2 for group norm)."""
    N, Mp, sc = packed.shape
    return pl.pallas_call(
        partial(_affine_act_kernel, do_gelu=do_gelu),
        out_shape=jax.ShapeDtypeStruct((N, Mp, sc), jnp.float32),
        grid=(N, Mp // tl),
        in_specs=[pl.BlockSpec((1, tl, sc), lambda n, t: (n, t, 0)),
                  pl.BlockSpec((1, 1, sc), lambda n, t: (n, 0, 0)),
                  pl.BlockSpec((1, 1, sc), lambda n, t: (n, 0, 0))],
        out_specs=pl.BlockSpec((1, tl, sc), lambda n, t: (n, t, 0)),
        compiler_params=pltpu.CompilerParams(
            dimension_semantics=("parallel", "parallel"),
            vmem_limit_bytes=_VMEM_LIMIT),
    )(packed, scale_packed.reshape(N, 1, sc), shift_packed.reshape(N, 1, sc))


def layernorm_act_rows(y_view, bias, gamma, beta, rows, do_gelu, eps=1e-5):
    """Per-time-step layer norm over channels (+ bias, affine, GELU), tiled over rows."""
    N, Lp, C = y_view.shape
    return pl.pallas_call(
        partial(_layernorm_act_kernel, do_gelu=do_gelu, eps=eps),
        out_shape=jax.ShapeDtypeStruct((N, Lp, C), jnp.float32),
        grid=(N, Lp // rows),
        in_specs=[pl.BlockSpec((1, rows, C), lambda n, t: (n, t, 0)),
                  pl.BlockSpec((1, C), lambda n, t: (0, 0)),
                  pl.BlockSpec((1, C), lambda n, t: (0, 0)),
                  pl.BlockSpec((1, C), lambda n, t: (0, 0))],
        out_specs=pl.BlockSpec((1, rows, C), lambda n, t: (n, t, 0)),
        compiler_params=pltpu.CompilerParams(
            dimension_semantics=("parallel", "parallel"),
            vmem_limit_bytes=_VMEM_LIMIT),
    )(y_view, bias.reshape(1, C), gamma.reshape(1, C), beta.reshape(1, C))


def transposed_conv_layer_forward(x_nlc, lyr, compute_dtype=jnp.float32, eps=1e-5):
    N = x_nlc.shape[0]
    Cout = lyr["w"].shape[1]
    s = lyr["stride"]
    norm = lyr["norm"]
    fused_post = (norm == "none")

    packed, L_out, tl = conv_transpose1d_packed(
        x_nlc, lyr["w"], lyr["b"], s,
        add_bias=fused_post,                         # group norm: bias cancels; layer norm: added below
        do_gelu=(fused_post and lyr["do_gelu"]),
        compute_dtype=compute_dtype)

    if norm == "none":
        # (N, M, s*Cout) -> (N, M*s, Cout) is a free row-major metadata reshape.
        y = packed.reshape(N, -1, Cout)[:, :L_out, :]
    elif norm == "group":
        # Fp32GroupNorm(dim, dim): per-channel mean/var over time -> two tiled passes.
        sums, sqs = groupnorm_stats_packed(packed, tl)           # per packed lane
        sums = sums.reshape(N, s, Cout).sum(axis=1)              # fold the stride phases
        sqs = sqs.reshape(N, s, Cout).sum(axis=1)
        mean = sums / float(L_out)
        var = jnp.maximum(sqs / float(L_out) - mean * mean, 0.0)
        inv = jax.lax.rsqrt(var + eps)
        scale = inv * lyr["gamma"][None, :]                      # (N, Cout)
        shift = lyr["beta"][None, :] - mean * scale              # conv bias cancels under the mean
        yp = affine_act_packed(packed, jnp.tile(scale, (1, s)), jnp.tile(shift, (1, s)),
                               tl, do_gelu=lyr["do_gelu"])
        y = yp.reshape(N, -1, Cout)[:, :L_out, :]
    else:  # "layer": Fp32LayerNorm over channels, per time step
        y_view = packed.reshape(N, -1, Cout)                     # free reshape
        yn = layernorm_act_rows(y_view, lyr["b"], lyr["gamma"], lyr["beta"],
                                rows=tl * s, do_gelu=lyr["do_gelu"], eps=eps)
        y = yn[:, :L_out, :]
    return y


# ----------------------------- module ------------------------------------------

class TransposedConvFeatureExtractionPallas:
    """JAX/Pallas port of TransposedConvFeatureExtraction (inference forward pass)."""

    def __init__(self, conv_transposed_layers, in_d=768, dropout=0.0, mode="default",
                 conv_bias=True, key=None, compute_dtype=jnp.float32):
        assert mode in {"default", "layer_norm"}
        # Dropout(p=0.0) / eval mode is the identity.
        # compute_dtype=jnp.bfloat16 is supported for the MXU matmul (fp32 accumulation) if
        # bit-exact fp32 parity is not required; default keeps fp32 semantics.
        if key is None:
            key = jax.random.PRNGKey(0)
        self.compute_dtype = compute_dtype
        self.layers = []
        n_layers = len(conv_transposed_layers)
        for i, cl in enumerate(conv_transposed_layers):
            assert len(cl) == 3, "invalid transposed conv definition " + str(cl)
            dim, k, stride = cl
            key, wk, bk = jax.random.split(key, 3)

            # nn.init.kaiming_normal_ on ConvTranspose1d weight (in_d, dim, k):
            # fan_in = weight.size(1) * receptive_field = dim * k, std = sqrt(2 / fan_in)
            fan_in = dim * k
            w = math.sqrt(2.0 / fan_in) * jax.random.normal(wk, (in_d, dim, k), jnp.float32)
            if conv_bias:
                bound = 1.0 / math.sqrt(fan_in)
                b = jax.random.uniform(bk, (dim,), jnp.float32, -bound, bound)
            else:
                b = jnp.zeros((dim,), jnp.float32)

            if mode == "layer_norm":
                norm = "layer"
            elif mode == "default" and i == 0:
                norm = "group"
            else:
                norm = "none"
            # TODO(synk): original calls Fp32LayerNorm(dim, dim, affine=True), an odd signature
            # for nn.LayerNorm; layer_norm mode here normalizes over channels with eps=1e-5.
            self.layers.append(dict(
                w=w, b=b, stride=int(stride), k=int(k), norm=norm,
                gamma=jnp.ones((dim,), jnp.float32),
                beta=jnp.zeros((dim,), jnp.float32),
                do_gelu=(i + 1 != n_layers),
            ))
            in_d = dim

    def __call__(self, x):
        # x: PyTorch layout (N, C, L)  (or (N, L), promoted to a single channel)
        if x.ndim < 3:
            x = x[:, None, :]
        x = jnp.transpose(x, (0, 2, 1)).astype(jnp.float32)            # NCW -> NLC
        for lyr in self.layers:
            x = transposed_conv_layer_forward(x, lyr, compute_dtype=self.compute_dtype)
        return jnp.transpose(x, (0, 2, 1))                              # NLC -> NCW


# ----------------------------- reference (verification) -------------------------

def _reference_forward(x_ncw, layers):
    """Plain-JAX reference mirroring the PyTorch module, for correctness checking."""
    x = jnp.transpose(x_ncw, (0, 2, 1)).astype(jnp.float32)
    for lyr in layers:
        w, b, s, K = lyr["w"], lyr["b"], lyr["stride"], lyr["k"]
        N, L, _ = x.shape
        Cout = w.shape[1]
        L_out = (L - 1) * s + K
        p = jnp.einsum("nlc,cok->nlko", x, w)
        y = jnp.zeros((N, L_out, Cout), jnp.float32)
        for k in range(K):
            y = y.at[:, k:k + (L - 1) * s + 1:s, :].add(p[:, :, k, :])
        y = y + b[None, None, :]
        if lyr["norm"] == "group":
            mean = jnp.mean(y, axis=1, keepdims=True)
            var = jnp.mean(jnp.square(y - mean), axis=1, keepdims=True)
            y = (y - mean) * jax.lax.rsqrt(var + 1e-5)
            y = y * lyr["gamma"][None, None, :] + lyr["beta"][None, None, :]
        elif lyr["norm"] == "layer":
            mean = jnp.mean(y, axis=2, keepdims=True)
            var = jnp.mean(jnp.square(y - mean), axis=2, keepdims=True)
            y = (y - mean) * jax.lax.rsqrt(var + 1e-5)
            y = y * lyr["gamma"][None, None, :] + lyr["beta"][None, None, :]
        if lyr["do_gelu"]:
            y = _gelu_exact(y)
        x = y
    return jnp.transpose(x, (0, 2, 1))


# ----------------------------- main ---------------------------------------------

if __name__ == "__main__":
    key = jax.random.PRNGKey(0)
    k_x, k_params = jax.random.split(key)

    # Small shapes: batch=2, in_d=32 channels, input length=8.
    N, C_IN, L_IN = 2, 32, 8
    layer_defs = [(16, 4, 2), (8, 4, 2)]   # (dim, kernel, stride) per layer

    x = jax.random.normal(k_x, (N, C_IN, L_IN), jnp.float32)   # PyTorch NCW input

    model = TransposedConvFeatureExtractionPallas(
        layer_defs, in_d=C_IN, dropout=0.0, mode="default", conv_bias=True, key=k_params)

    out = jax.block_until_ready(model(x))

    l_exp = L_IN
    for (_, k, s) in layer_defs:
        l_exp = (l_exp - 1) * s + k
    assert out.shape == (N, layer_defs[-1][0], l_exp), out.shape
    assert bool(jnp.all(jnp.isfinite(out)))

    ref = jax.block_until_ready(_reference_forward(x, model.layers))
    err = float(jnp.max(jnp.abs(out - ref)))
    assert jnp.allclose(out, ref, rtol=1e-3, atol=1e-3), err

    print("KERNEL_OK")
</pallas_src>

<mosaic_0001>
module attributes {stable_mosaic.version = 11 : i64} {
  func.func @_convT_fused_kernel(%arg0: i32, %arg1: i32, %arg2: memref<1x8x32xf32, #tpu.memory_space<vmem>>, %arg3: memref<32x64xf32, #tpu.memory_space<vmem>>, %arg4: memref<1x32xf32, #tpu.memory_space<vmem>>, %arg5: memref<1x8x32xf32, #tpu.memory_space<vmem>>, %arg6: memref<9x32xf32, #tpu.memory_space<vmem>>, %arg7: memref<1x32xf32, #tpu.memory_space<vmem>>) attributes {dimension_semantics = [#tpu.dimension_semantics<parallel>, #tpu.dimension_semantics<arbitrary>], iteration_bounds = array<i64: 2, 2>, scalar_prefetch = 0 : i64, scratch_operands = 2 : i64, tpu.core_type = #tpu.core_type<tc>, window_params = [{transform_indices = @transform_0, window_bounds = array<i64: 1, 8, 32>}, {pipeline_mode = #tpu.pipeline_mode<synchronous>, transform_indices = @transform_1, window_bounds = array<i64: 32, 64>}, {pipeline_mode = #tpu.pipeline_mode<synchronous>, transform_indices = @transform_2, window_bounds = array<i64: 1, 32>}, {transform_indices = @transform_3, window_bounds = array<i64: 1, 8, 32>}]} {
    %c0 = arith.constant 0 : index
    %c0_0 = arith.constant 0 : index
    %c0_1 = arith.constant 0 : index
    %0 = vector.load %arg2[%c0, %c0_0, %c0_1] : memref<1x8x32xf32, #tpu.memory_space<vmem>>, vector<1x8x32xf32>
    %1 = vector.shape_cast %0 : vector<1x8x32xf32> to vector<8x32xf32>
    %c0_2 = arith.constant 0 : index
    %c0_3 = arith.constant 0 : index
    %2 = vector.load %arg3[%c0_2, %c0_3] : memref<32x64xf32, #tpu.memory_space<vmem>>, vector<32x64xf32>
    %cst = arith.constant dense<0.000000e+00> : vector<8x64xf32>
    %3 = tpu.matmul %1, %2, %cst {dimension_numbers = #tpu.dot_dimension_numbers<[1], [0], [0], [1], [0, 0, 1, 1], [], []>} : vector<8x32xf32>, vector<32x64xf32>, vector<8x64xf32> -> vector<8x64xf32>
    %4 = vector.extract_strided_slice %3 {offsets = [0, 0], sizes = [8, 32], strides = [1, 1]} : vector<8x64xf32> to vector<8x32xf32>
    %c0_4 = arith.constant 0 : index
    %c0_5 = arith.constant 0 : index
    %5 = vector.load %arg6[%c0_4, %c0_5] : memref<9x32xf32, #tpu.memory_space<vmem>>, vector<8x32xf32>
    tpu.vector_store %arg6[%c0_4, %c0_5], %4 {strides = array<i32>} : memref<9x32xf32, #tpu.memory_space<vmem>>, vector<8x32xf32>,
    %cst_6 = arith.constant 0.000000e+00 : f32
    %6 = vector.broadcast %cst_6 : f32 to vector<1x32xf32>
    %c8 = arith.constant 8 : index
    %c0_7 = arith.constant 0 : index
    %7 = vector.load %arg6[%c8, %c0_7] : memref<9x32xf32, #tpu.memory_space<vmem>>, vector<1x32xf32>
    tpu.vector_store %arg6[%c8, %c0_7], %6 {strides = array<i32>} : memref<9x32xf32, #tpu.memory_space<vmem>>, vector<1x32xf32>,
    %c1 = arith.constant 1 : index
    %c0_8 = arith.constant 0 : index
    %8 = vector.load %arg6[%c1, %c0_8] : memref<9x32xf32, #tpu.memory_space<vmem>>, vector<8x32xf32>
    %9 = vector.extract_strided_slice %3 {offsets = [0, 32], sizes = [8, 32], strides = [1, 1]} : vector<8x64xf32> to vector<8x32xf32>
    %10 = arith.addf %8, %9 : vector<8x32xf32>
    %c1_9 = arith.constant 1 : index
    %c0_10 = arith.constant 0 : index
    %11 = vector.load %arg6[%c1_9, %c0_10] : memref<9x32xf32, #tpu.memory_space<vmem>>, vector<8x32xf32>
    tpu.vector_store %arg6[%c1_9, %c0_10], %10 {strides = array<i32>} : memref<9x32xf32, #tpu.memory_space<vmem>>, vector<8x32xf32>,
    %c0_i32 = arith.constant 0 : i32
    %12 = arith.cmpi sgt, %arg1, %c0_i32 : i32
    %13 = arith.extui %12 : i1 to i32
    %c0_i32_11 = arith.constant 0 : i32
    %14 = arith.cmpi ne, %13, %c0_i32_11 : i32
    scf.if %14 {
      %c0_21 = arith.constant 0 : index
      %c0_22 = arith.constant 0 : index
      %21 = vector.load %arg6[%c0_21, %c0_22] : memref<9x32xf32, #tpu.memory_space<vmem>>, vector<1x32xf32>
      %c0_23 = arith.constant 0 : index
      %c0_24 = arith.constant 0 : index
      %22 = vector.load %arg7[%c0_23, %c0_24] : memref<1x32xf32, #tpu.memory_space<vmem>>, vector<1x32xf32>
      %23 = arith.addf %21, %22 : vector<1x32xf32>
      %c0_25 = arith.constant 0 : index
      %c0_26 = arith.constant 0 : index
      %24 = vector.load %arg6[%c0_25, %c0_26] : memref<9x32xf32, #tpu.memory_space<vmem>>, vector<1x32xf32>
      tpu.vector_store %arg6[%c0_25, %c0_26], %23 {strides = array<i32>} : memref<9x32xf32, #tpu.memory_space<vmem>>, vector<1x32xf32>,
    } else {
    }
    %c0_12 = arith.constant 0 : index
    %c0_13 = arith.constant 0 : index
    %15 = vector.load %arg6[%c0_12, %c0_13] : memref<9x32xf32, #tpu.memory_space<vmem>>, vector<8x32xf32>
    %c0_14 = arith.constant 0 : index
    %c0_15 = arith.constant 0 : index
    %c0_16 = arith.constant 0 : index
    %16 = vector.load %arg5[%c0_14, %c0_15, %c0_16] : memref<1x8x32xf32, #tpu.memory_space<vmem>>, vector<1x8x32xf32>
    %17 = vector.shape_cast %16 : vector<1x8x32xf32> to vector<8x32xf32>
    %18 = vector.shape_cast %15 : vector<8x32xf32> to vector<1x8x32xf32>
    tpu.vector_store %arg5[%c0_14, %c0_15, %c0_16], %18 {strides = array<i32>} : memref<1x8x32xf32, #tpu.memory_space<vmem>>, vector<1x8x32xf32>,
    %c8_17 = arith.constant 8 : index
    %c0_18 = arith.constant 0 : index
    %19 = vector.load %arg6[%c8_17, %c0_18] : memref<9x32xf32, #tpu.memory_space<vmem>>, vector<1x32xf32>
    %c0_19 = arith.constant 0 : index
    %c0_20 = arith.constant 0 : index
    %20 = vector.load %arg7[%c0_19, %c0_20] : memref<1x32xf32, #tpu.memory_space<vmem>>, vector<1x32xf32>
    tpu.vector_store %arg7[%c0_19, %c0_20], %19 {strides = array<i32>} : memref<1x32xf32, #tpu.memory_space<vmem>>, vector<1x32xf32>,
    return
  }
  func.func @transform_0(%arg0: i32, %arg1: i32) -> (i32, i32, i32) {
    %c0_i32 = arith.constant 0 : i32
    %c0_i32_0 = arith.constant 0 : i32
    return %arg0, %arg1, %c0_i32 : i32, i32, i32
  }
  func.func @transform_1(%arg0: i32, %arg1: i32) -> (i32, i32) {
    %c0_i32 = arith.constant 0 : i32
    %c0_i32_0 = arith.constant 0 : i32
    %c0_i32_1 = arith.constant 0 : i32
    return %c0_i32, %c0_i32_0 : i32, i32
  }
  func.func @transform_2(%arg0: i32, %arg1: i32) -> (i32, i32) {
    %c0_i32 = arith.constant 0 : i32
    %c0_i32_0 = arith.constant 0 : i32
    %c0_i32_1 = arith.constant 0 : i32
    return %c0_i32, %c0_i32_0 : i32, i32
  }
  func.func @transform_3(%arg0: i32, %arg1: i32) -> (i32, i32, i32) {
    %c0_i32 = arith.constant 0 : i32
    %c0_i32_0 = arith.constant 0 : i32
    return %arg0, %arg1, %c0_i32 : i32, i32, i32
  }
}

</mosaic_0001>

<llo_original>
// kernel: tpu_custom_call.1
$region0: #{tpu_custom_call.1}
  #allocation0 [shape = 'u32[]', space=smem, size = 0x4, offset = 0x4, fixed_abs, tag = 'smem constant byte address 0x4 - core index']
  #allocation1 [shape = 'u32[144,128]{1,0:T(1,128)}', space=vmem, size = 0x12000, scoped, tag = 'internal scratch']
  #allocation2 [shape = 'f32[9,32]{1,0:T(8,128)}', space=vmem, size = 0x2000, scoped, tag = 'scratch operand']
  #allocation3 [shape = 'f32[1,32]{1,0:T(1,128)}', space=vmem, size = 0x200, scoped, tag = 'scratch operand']
  %s0 = inlined_call_operand.hbm [shape: f32[2,16,32], index: 0, kind: input, shape index: {}]
  %s1 = inlined_call_operand.hbm [shape: f32[32,64], index: 1, kind: input, shape index: {}]
  %s2 = inlined_call_operand.vmem [shape: f32[1,32], index: 2, kind: input, shape index: {}]
  %s3 = inlined_call_operand.hbm [shape: f32[2,16,32], index: 3, kind: output, shape index: {}]
  %s4 = sld [smem:[#allocation0]]
  $region57: #{tpu_custom_call.1} parent=0
    _
  %s6 = ssub.s32 1, %s4
  %s7 = scalar_select 0, %s6, %s4
  $region1: #{tpu_custom_call.1} parent=0
    #allocation4 [shape = 'u8[8192]{0}', space=vmem, size = 0x2000, scoped, tag = 'input window, operand 0']
    #allocation5 [shape = 's32[2]{0}', space=sflag, size = 0x8, scoped, tag = 'scoped memory for tpu_custom_call.1']
    #allocation6 [shape = 's32[2]{0}', space=sflag, size = 0x8, scoped, tag = 'scoped memory for tpu_custom_call.1']
    #allocation7 [shape = 'u8[16384]{0}', space=vmem, size = 0x4000, scoped, tag = 'input window, operand 1, single buffered']
    #allocation8 [shape = 's32[1]{0}', space=sflag, size = 0x4, scoped, tag = 'scoped memory for tpu_custom_call.1']
    #allocation9 [shape = 'u8[8192]{0}', space=vmem, size = 0x2000, scoped, tag = 'output window, operand 0']
    %8 = vsyncpa [#allocation5], 0
    %s9 = scalar_lea.sflag [#allocation5], 1
    %10 = vsyncpa %s9, 0
    %11 = vsyncpa [#allocation8], 0
    %12 = vsyncpa [#allocation6], 0
    %s13 = scalar_lea.sflag [#allocation6], 1
    %14 = vsyncpa %s13, 0
    loop: start=0, step=1, limit=6
    $region2: #{tpu_custom_call.1} parent=1 // loop_pre_header
      _
    $region3: #{tpu_custom_call.1} parent=1 // loop_header
      %s16 = sphi 0, %s20
      %p17 = scmp.ge.s32.totalorder %s16, 6
      %s23 = sphi 0, %s35
      %s24 = sphi 0, %s31
      %s25 = sphi 0, %s23
      %s26 = sphi 0, %s24
      %s27 = sphi 0, %s25
      %s28 = sphi 0, %s26
      %s40 = sphi 0, %s42
      %s43 = sphi 0, %s40
      %s44 = sphi 0, %s43
      %s60 = sphi 0, %s44
      %s64 = sphi 0, %s64
      %s66 = sphi 0, %s64
      %s67 = sphi 0, %s66
      %s81 = sphi 0, %s67
      %s85 = sphi 0, %s85
      %s87 = sphi 0, %s85
      %s88 = sphi 0, %s87
      %s102 = sphi 0, %s88
      %s110 = sphi 0, %s112
      %s113 = sphi 0, %s110
      %s114 = sphi 0, %s113
      %s130 = sphi 0, %s114
    $region4: #{tpu_custom_call.1} parent=1 // loop_header_branch
      %19 = sbr.rel (%p17) target = $region8
    $region5: #{tpu_custom_call.1} parent=1 // loop_body
      %s21 = ssub.s32 %s16, 1
      %s22 = ssub.s32 %s16, 2
      %s29 = sadd.s32 1, %s24
      %p30 = scmp.ge.s32.totalorder %s29, 2
      %s31 = scalar_select %p30, 0, %s29
      %s32 = sadd.s32 1, %s23
      %s33 = scalar_select %p30, %s32, %s23
      %p34 = scmp.ge.s32.totalorder %s33, 2
      %s35 = scalar_select %p34, 0, %s33
      %s36 = ssub.s32 %s23, %s35
      %s37 = ssub.s32 %s24, %s31
      %s38 = sor.u32 %s36, %s37
      %p39 = scmp.eq.s32.totalorder %s38, 0
      %s41 = sadd.s32 %s40, 1
      %s42 = scalar_select %p39, %s40, %s41
      %p45 = pneg %p39
      %p46 = scmp.eq.s32.totalorder %s16, 3
      %p47 = por %p45, %p46
      %p48 = scmp.ne.s32.totalorder %s40, %s43
      %p49 = scmp.eq.s32.totalorder %s16, 0
      %p50 = por %p48, %p49
      %p51 = scmp.ne.s32.totalorder %s40, %s43
      %p52 = scmp.eq.s32.totalorder %s21, 3
      %p53 = por %p51, %p52
      %p54 = scmp.ne.s32.totalorder %s43, %s44
      %p55 = scmp.eq.s32.totalorder %s21, 0
      %p56 = por %p54, %p55
      %p57 = scmp.ne.s32.totalorder %s43, %s44
      %p58 = scmp.eq.s32.totalorder %s22, 3
      %p59 = por %p57, %p58
      %p61 = scmp.ne.s32.totalorder %s44, %s60
      %p62 = scmp.eq.s32.totalorder %s22, 0
      %p63 = por %p61, %p62
      %s65 = sadd.s32 %s64, 1
      %p68 = scmp.eq.s32.totalorder %s16, 3
      %p69 = scmp.ne.s32.totalorder %s64, %s66
      %p70 = scmp.eq.s32.totalorder %s16, 0
      %p71 = por %p69, %p70
      %p72 = scmp.ne.s32.totalorder %s64, %s66
      %p73 = scmp.eq.s32.totalorder %s21, 3
      %p74 = por %p72, %p73
      %p75 = scmp.ne.s32.totalorder %s66, %s67
      %p76 = scmp.eq.s32.totalorder %s21, 0
      %p77 = por %p75, %p76
      %p78 = scmp.ne.s32.totalorder %s66, %s67
      %p79 = scmp.eq.s32.totalorder %s22, 3
      %p80 = por %p78, %p79
      %p82 = scmp.ne.s32.totalorder %s67, %s81
      %p83 = scmp.eq.s32.totalorder %s22, 0
      %p84 = por %p82, %p83
      %s86 = sadd.s32 %s85, 1
      %p89 = scmp.eq.s32.totalorder %s16, 3
      %p90 = scmp.ne.s32.totalorder %s85, %s87
      %p91 = scmp.eq.s32.totalorder %s16, 0
      %p92 = por %p90, %p91
      %p93 = scmp.ne.s32.totalorder %s85, %s87
      %p94 = scmp.eq.s32.totalorder %s21, 3
      %p95 = por %p93, %p94
      %p96 = scmp.ne.s32.totalorder %s87, %s88
      %p97 = scmp.eq.s32.totalorder %s21, 0
      %p98 = por %p96, %p97
      %p99 = scmp.ne.s32.totalorder %s87, %s88
      %p100 = scmp.eq.s32.totalorder %s22, 3
      %p101 = por %p99, %p100
      %p103 = scmp.ne.s32.totalorder %s88, %s102
      %p104 = scmp.eq.s32.totalorder %s22, 0
      %p105 = por %p103, %p104
      %s106 = ssub.s32 %s23, %s35
      %s107 = ssub.s32 %s24, %s31
      %s108 = sor.u32 %s106, %s107
      %p109 = scmp.eq.s32.totalorder %s108, 0
      %s111 = sadd.s32 %s110, 1
      %s112 = scalar_select %p109, %s110, %s111
      %p115 = pneg %p109
      %p116 = scmp.eq.s32.totalorder %s16, 3
      %p117 = por %p115, %p116
      %p118 = scmp.ne.s32.totalorder %s110, %s113
      %p119 = scmp.eq.s32.totalorder %s16, 0
      %p120 = por %p118, %p119
      %p121 = scmp.ne.s32.totalorder %s110, %s113
      %p122 = scmp.eq.s32.totalorder %s21, 3
      %p123 = por %p121, %p122
      %p124 = scmp.ne.s32.totalorder %s113, %s114
      %p125 = scmp.eq.s32.totalorder %s21, 0
      %p126 = por %p124, %p125
      %p127 = scmp.ne.s32.totalorder %s113, %s114
      %p128 = scmp.eq.s32.totalorder %s22, 3
      %p129 = por %p127, %p128
      %p131 = scmp.ne.s32.totalorder %s114, %s130
      %p132 = scmp.eq.s32.totalorder %s22, 0
      %p133 = por %p131, %p132
      %p134 = scmp.le.s32.totalorder 1, %s16
      %p135 = scmp.lt.s32.totalorder %s16, 5
      %p136 = pnand %p134, %p135
      %p137 = pneg %p136
      // Predicated region
      $region9: #{tpu_custom_call.1} parent=5 // pred_check
        _
      $region10: #{tpu_custom_call.1} parent=5 // pred_check_branch
        %139 = sbr.rel (%p136) target = $region12
      $region11: #{tpu_custom_call.1} parent=5 // pred_region
        %s140 = ssub.s32 %s16, 1
        // Predicated region
        $region13: #{tpu_custom_call.1} parent=11 // pred_check
          %p141 = pneg %p77
        $region14: #{tpu_custom_call.1} parent=11 // pred_check_branch
          %143 = sbr.rel (%p141) target = $region16
        $region15: #{tpu_custom_call.1} parent=11 // pred_region
          %s145 = ssub.s32 512, 512
          %146 = vsyncadd [#allocation8], %s145
          %s147 = sshll.u32 [#allocation7], 4
          %s148 = int_to_ptr.vmem [resolvable:$true] %s147
          %153 = dma.hbm_to_vmem [thread:$0]  %s1, 512, %s148, [#allocation8], 128, 128, 8
        $region16: #{tpu_custom_call.1} parent=11 // pred_fallthru
          _
        // Predicated region
        $region17: #{tpu_custom_call.1} parent=11 // pred_check
          %p154 = pneg %p98
        $region18: #{tpu_custom_call.1} parent=11 // pred_check_branch
          %156 = sbr.rel (%p154) target = $region20
        $region19: #{tpu_custom_call.1} parent=11 // pred_region
          _
        $region20: #{tpu_custom_call.1} parent=11 // pred_fallthru
          _
      $region12: #{tpu_custom_call.1} parent=5 // pred_fallthru
        _
      %p157 = scmp.lt.s32.totalorder %s16, 4
      // Predicated region
      $region21: #{tpu_custom_call.1} parent=5 // pred_check
        %p158 = pneg %p157
      $region22: #{tpu_custom_call.1} parent=5 // pred_check_branch
        %160 = sbr.rel (%p158) target = $region24
      $region23: #{tpu_custom_call.1} parent=5 // pred_region
        // Predicated region
        $region25: #{tpu_custom_call.1} parent=23 // pred_check
          %p161 = pneg %p50
        $region26: #{tpu_custom_call.1} parent=23 // pred_check_branch
          %163 = sbr.rel (%p161) target = $region28
        $region27: #{tpu_custom_call.1} parent=23 // pred_region
          %s164 = sand.u32 %s40, 1
          %s165 = scalar_lea.sflag [#allocation5], %s164
          %s166 = sand.u32 %s40, 1
          %s167 = smul.addr %s166, 8
          %s168 = scalar_lea.vmem [#allocation4], %s167
          %s170 = ssub.s32 128, 128
          %171 = vsyncadd %s165, %s170
          %s172 = smul.addr %s23, 2
          %s173 = sadd.s32 %s24, %s172
          %s174 = smul.addr %s173, 128
          %s175 = scalar_lea.hbm %s0, %s174
          %s177 = sshll.u32 %s168, 4
          %s178 = int_to_ptr.vmem [resolvable:$true] %s177
          %180 = dma.hbm_to_vmem [thread:$0]  %s175, 128, %s178, %s165
        $region28: #{tpu_custom_call.1} parent=23 // pred_fallthru
          _
      $region24: #{tpu_custom_call.1} parent=5 // pred_fallthru
        _
      %p181 = scmp.le.s32.totalorder 1, %s16
      %p182 = scmp.lt.s32.totalorder %s16, 5
      %p183 = pnand %p181, %p182
      %p184 = pneg %p183
      // Predicated region
      $region29: #{tpu_custom_call.1} parent=5 // pred_check
        _
      $region30: #{tpu_custom_call.1} parent=5 // pred_check_branch
        %186 = sbr.rel (%p183) target = $region32
      $region31: #{tpu_custom_call.1} parent=5 // pred_region
        %s187 = ssub.s32 %s16, 1
        %s188 = sand.u32 %s43, 1
        %s189 = scalar_lea.sflag [#allocation5], %s188
        %s190 = sand.u32 %s43, 1
        %s191 = smul.addr %s190, 8
        %s192 = scalar_lea.vmem [#allocation4], %s191
        // Predicated region
        $region33: #{tpu_custom_call.1} parent=31 // pred_check
          %p193 = pneg %p56
        $region34: #{tpu_custom_call.1} parent=31 // pred_check_branch
          %195 = sbr.rel (%p193) target = $region36
        $region35: #{tpu_custom_call.1} parent=31 // pred_region
          %196 = dma.done %s189, 128
        $region36: #{tpu_custom_call.1} parent=31 // pred_fallthru
          _
        // Predicated region
        $region37: #{tpu_custom_call.1} parent=31 // pred_check
          %p197 = pneg %p77
        $region38: #{tpu_custom_call.1} parent=31 // pred_check_branch
          %199 = sbr.rel (%p197) target = $region40
        $region39: #{tpu_custom_call.1} parent=31 // pred_region
          %200 = dma.done [#allocation8], 512
        $region40: #{tpu_custom_call.1} parent=31 // pred_fallthru
          _
        %s201 = sand.u32 %s43, 1
        %s202 = scalar_lea.sflag [#allocation5], %s201
        %s203 = sand.u32 %s43, 1
        %s204 = smul.addr %s203, 8
        %s205 = scalar_lea.vmem [#allocation4], %s204
        %p206 = pneg %p56
        %p207 = pneg %p53
        %p208 = pneg %p77
        %p209 = pneg %p74
        %p210 = pneg %p98
        %p211 = pneg %p95
        %p212 = pneg %p126
        %p213 = pneg %p123
        %s214 = sand.u32 %s113, 1
        %s215 = scalar_lea.sflag [#allocation6], %s214
        %s216 = sand.u32 %s113, 1
        %s217 = smul.addr %s216, 8
        %s218 = scalar_lea.vmem [#allocation9], %s217
        %v219 = vld [vmem:[%s192] sm:$0xff]
        %v220 = vld [vmem:[#allocation7] sm:$0xff]
        %v221 = vld [vmem:[#allocation7 + $0x8] sm:$0xff]
        %v222 = vld [vmem:[#allocation7 + $0x10] sm:$0xff]
        %v223 = vld [vmem:[#allocation7 + $0x18] sm:$0xff]
        %vm224 = vcmask 261120
        %v226 = vsel %vm224, %v219, 0
        %228 = vmatprep.subr.mxu0 0.0
        %229 = vmatpush1.msra.mxu0 %v220
        %230 = vmatprep.subr.mxu0 0.0
        %231 = vmatpush1.msra.mxu0 %v221
        %232 = vmatprep.subr.mxu0 0.0
        %233 = vmatpush1.msra.mxu0 %v222
        %234 = vmatprep.subr.mxu0 0.0
        %235 = vmatpush1.msra.mxu0 %v223
        %236 = vmatprep.subr.mxu0 0.0
        %237 = vmatpush1.msra.mxu0 0.0
        %238 = vmatprep.subr.mxu0 0.0
        %239 = vmatpush1.msra.mxu0 0.0
        %240 = vmatprep.subr.mxu0 0.0
        %241 = vmatpush1.msra.mxu0 0.0
        %242 = vmatprep.subr.mxu0 0.0
        %243 = vmatpush1.msra.mxu0 0.0
        %244 = vmatprep.subr.mxu0 0.0
        %245 = vmatpush1.msra.mxu0 0.0
        %246 = vmatprep.subr.mxu0 0.0
        %247 = vmatpush1.msra.mxu0 0.0
        %248 = vmatprep.subr.mxu0 0.0
        %249 = vmatpush1.msra.mxu0 0.0
        %250 = vmatprep.subr.mxu0 0.0
        %251 = vmatpush1.msra.mxu0 0.0
        %252 = vmatprep.subr.mxu0 0.0
        %253 = vmatpush1.msra.mxu0 0.0
        %254 = vmatprep.subr.mxu0 0.0
        %255 = vmatpush1.msra.mxu0 0.0
        %256 = vmatprep.subr.mxu0 0.0
        %257 = vmatpush1.msra.mxu0 0.0
        %258 = vmatprep.subr.mxu0 0.0
        %259 = vmatpush1.msra.mxu0 0.0
        %260 = vmatprep.subr.mxu0 0.0
        %261 = vmatpush1.msra.mxu0 0.0
        %262 = vmatprep.subr.mxu0 0.0
        %263 = vmatpush1.msra.mxu0 0.0
        %264 = vmatprep.subr.mxu0 0.0
        %265 = vmatpush1.msra.mxu0 0.0
        %266 = vmatprep.subr.mxu0 0.0
        %267 = vmatpush1.msra.mxu0 0.0
        %268 = vmatprep.subr.mxu0 0.0
        %269 = vmatpush1.msra.mxu0 0.0
        %270 = vmatprep.subr.mxu0 0.0
        %271 = vmatpush1.msra.mxu0 0.0
        %272 = vmatprep.subr.mxu0 0.0
        %273 = vmatpush1.msra.mxu0 0.0
        %274 = vmatprep.subr.mxu0 0.0
        %275 = vmatpush1.msra.mxu0 0.0
        %276 = vmatprep.subr.mxu0 0.0
        %277 = vmatpush1.msra.mxu0 0.0
        %278 = vmatprep.subr.mxu0 0.0
        %279 = vmatpush1.msra.mxu0 0.0
        %280 = vmatprep.subr.mxu0 0.0
        %281 = vmatpush1.msra.mxu0 0.0
        %282 = vmatprep.subr.mxu0 0.0
        %283 = vmatpush1.msra.mxu0 0.0
        %284 = vmatprep.subr.mxu0 0.0
        %285 = vmatpush1.msra.mxu0 0.0
        %286 = vmatprep.subr.mxu0 0.0
        %287 = vmatpush1.msra.mxu0 0.0
        %288 = vmatprep.subr.mxu0 0.0
        %289 = vmatpush1.msra.mxu0 0.0
        %290 = vmatprep.subr.mxu0 0.0
        %291 = vmatpush1.msra.mxu0 0.0
        %292 = vmatprep.mubr.f32.mxu0 0.0
        %293 = vmatmul.mubr.f32.gmra.mrb[0].mxu0 %v226
        %v294 = vpop.f32.mrb[0].mxu0
        %v295 = vadd.f32 0.0, %v294
        %v296 = vpop.f32.mrb[0].mxu0
        %297 = vdwg.mxu0
        %298 = vst.msk [vmem:[#allocation2] sm:$0xff] %vm224, %v295
        %vm299 = vcmask 253952
        %300 = vst.msk [vmem:[#allocation2 + $0x8] sm:$0x1] %vm299, 0.0
        %v301 = vld [vmem:[#allocation2 + $0x1] sm:$0xff]
        %303 = vrot.lane.b32.xlu0 %v295, 96
        %v304 = vpop.permute.xlu0 %303
        %v306 = vadd.f32 %v301, %v304
        %307 = vst.msk [vmem:[#allocation2 + $0x1] sm:$0xff] %vm224, %v306
        %p308 = scmp.gt.s32.totalorder %s26, 0
        // Predicated region
        $region41: #{tpu_custom_call.1} parent=31 // pred_check
          %p309 = pneg %p308
        $region42: #{tpu_custom_call.1} parent=31 // pred_check_branch
          %311 = sbr.rel (%p309) target = $region44
        $region43: #{tpu_custom_call.1} parent=31 // pred_region
          %v312 = vld [vmem:[#allocation2] sm:$0x1]
          %v313 = vld [vmem:[#allocation3] sm:$0x1]
          %v314 = vadd.f32 %v312, %v313
          %315 = vst.msk [vmem:[#allocation2] sm:$0x1] %vm299, %v314
        $region44: #{tpu_custom_call.1} parent=31 // pred_fallthru
          _
        %v316 = vld [vmem:[#allocation2] sm:$0xff]
        %317 = vst.msk [vmem:[%s218] sm:$0xff] %vm224, %v316
        %v318 = vld [vmem:[#allocation2 + $0x8] sm:$0x1]
        %319 = vst.msk [vmem:[#allocation3] sm:$0x1] %vm299, %v318
        %s320 = sand.u32 %s113, 1
        %s321 = scalar_lea.sflag [#allocation6], %s320
        %s322 = sand.u32 %s113, 1
        %s323 = smul.addr %s322, 8
        %s324 = scalar_lea.vmem [#allocation9], %s323
        // Predicated region
        $region45: #{tpu_custom_call.1} parent=31 // pred_check
          %p325 = pneg %p123
        $region46: #{tpu_custom_call.1} parent=31 // pred_check_branch
          %327 = sbr.rel (%p325) target = $region48
        $region47: #{tpu_custom_call.1} parent=31 // pred_region
          %s329 = ssub.s32 128, 128
          %330 = vsyncadd %s321, %s329
          %s331 = smul.addr %s25, 2
          %s332 = sadd.s32 %s26, %s331
          %s333 = smul.addr %s332, 128
          %s334 = scalar_lea.hbm %s3, %s333
          %s336 = sshll.u32 %s324, 4
          %s337 = int_to_ptr.vmem [resolvable:$true] %s336
          %339 = dma.vmem_to_hbm [thread:$0]  %s337, 128, %s334, %s321
        $region48: #{tpu_custom_call.1} parent=31 // pred_fallthru
          _
      $region32: #{tpu_custom_call.1} parent=5 // pred_fallthru
        _
      %p340 = scmp.le.s32.totalorder 2, %s16
      // Predicated region
      $region49: #{tpu_custom_call.1} parent=5 // pred_check
        %p341 = pneg %p340
      $region50: #{tpu_custom_call.1} parent=5 // pred_check_branch
        %343 = sbr.rel (%p341) target = $region52
      $region51: #{tpu_custom_call.1} parent=5 // pred_region
        %s344 = ssub.s32 %s16, 2
        // Predicated region
        $region53: #{tpu_custom_call.1} parent=51 // pred_check
          %p345 = pneg %p129
        $region54: #{tpu_custom_call.1} parent=51 // pred_check_branch
          %347 = sbr.rel (%p345) target = $region56
        $region55: #{tpu_custom_call.1} parent=51 // pred_region
          %s348 = sand.u32 %s114, 1
          %s349 = scalar_lea.sflag [#allocation6], %s348
          %s350 = sand.u32 %s114, 1
          %s351 = smul.addr %s350, 8
          %s352 = scalar_lea.vmem [#allocation9], %s351
          %353 = dma.done %s349, 128
        $region56: #{tpu_custom_call.1} parent=51 // pred_fallthru
          _
      $region52: #{tpu_custom_call.1} parent=5 // pred_fallthru
        _
    $region6: #{tpu_custom_call.1} parent=1 // loop_footer
      %s20 = sadd.s32 1, %s16
    $region7: #{tpu_custom_call.1} parent=1 // loop_footer_branch
      %15 = sbr.rel target = $region3
    $region8: #{tpu_custom_call.1} parent=1 // loop_exit
      _
    %354 = vsyncpa [#allocation5], 1
    %s355 = scalar_lea.sflag [#allocation5], 1
    %356 = vsyncpa %s355, 1
    %357 = vsyncpa [#allocation8], 1
    %358 = vsyncpa [#allocation6], 1
    %s359 = scalar_lea.sflag [#allocation6], 1
    %360 = vsyncpa %s359, 1

</llo_original>
